<compile_context>
chip_gen: v5e
topology: v5e:2x2
jax: 0.10.0
libtpu: 0.0.40
codegen_flags: <defaults>
</compile_context>

<pallas_src>
import functools

import numpy as np
import jax
import jax.numpy as jnp
from jax.experimental import pallas as pl
from jax.experimental.pallas import tpu as pltpu

KERNEL_MUL = 2.0
KERNEL_NUM = 5
_LANE = 128
_SUBLANE = 8


def _cdiv(a, b):
    return -(-a // b)


def _round_up(x, m):
    return ((x + m - 1) // m) * m


def _reduce_tile_to_vreg(x):
    """(T, T) f32 -> (8, 128) f32 partial sum.

    Only 128/8-aligned static slices + VALU vreg adds; no XLU reduce,
    no reshape that crosses (8,128) tile boundaries.
    """
    t_rows, t_cols = x.shape
    acc = x[:, 0:_LANE]
    for k in range(1, t_cols // _LANE):
        acc = acc + x[:, k * _LANE:(k + 1) * _LANE]        # (T, 128)
    part = acc[0:_SUBLANE, :]
    for k in range(1, t_rows // _SUBLANE):
        part = part + acc[k * _SUBLANE:(k + 1) * _SUBLANE, :]   # (8, 128)
    return part


def _mmd_pair_kernel(ri_ref, ci_ref, sc_ref,        # scalar-prefetch (SMEM int32)
                     nib_ref,                       # (K,) -1/bw scalars, SMEM f32
                     rows_ref, cols_ref,            # (T, D) bf16 slabs
                     srow_ref, scol_ref,            # (T,1) / (1,T) f32 domain signs
                     nrow_ref, ncol_ref,            # (T,1) / (1,T) f32 sq-norms
                     out_ref,                       # (1, 8, 128) f32 partial sum
                     *, pairs_per_core, kernel_mul, kernel_num):
    p = pl.program_id(0) * pairs_per_core + pl.program_id(1)
    # Pair scale: 1 = diagonal tile, 2 = off-diagonal (covers its mirror), 0 = pad.
    scale = sc_ref[p].astype(jnp.float32)

    # Pairwise squared distances: l2[a,b] = |r_a|^2 + |c_b|^2 - 2 <r_a, c_b>.
    # Gram on the MXU (bf16 in, f32 accumulate, feature dim contracted on both
    # operands -> no explicit transpose); norms arrive pre-oriented.
    gram = jax.lax.dot_general(rows_ref[...], cols_ref[...],
                               (((1,), (1,)), ((), ())),
                               preferred_element_type=jnp.float32)       # (T, T)
    l2 = jnp.maximum(nrow_ref[...] + ncol_ref[...] - 2.0 * gram, 0.0)

    if kernel_mul == 2.0:
        # exp(-l2/bw_k) for bw_k = bw_max / 2^k  ==  t^(2^k), t = exp(-l2/bw_max):
        # one EUP exp + (kernel_num-1) cheap VPU squarings.
        t = jnp.exp(l2 * nib_ref[kernel_num - 1])
        ksum = t
        for _ in range(kernel_num - 1):
            t = t * t
            ksum = ksum + t
    else:
        # Generic fallback: still multiply by precomputed -1/bw scalars.
        ksum = jnp.exp(l2 * nib_ref[0])
        for k in range(1, kernel_num):
            ksum = ksum + jnp.exp(l2 * nib_ref[k])

    # Rank-1 signed/valid mask (+1 same-domain, -1 cross, 0 padding); the pair
    # scale is folded into the tiny (T,1) row-sign vector.
    signed = (ksum * scol_ref[...]) * (srow_ref[...] * scale)

    out_ref[0] = _reduce_tile_to_vreg(signed)


def mmd_loss_rbf(source, target, kernel_mul=KERNEL_MUL, kernel_num=KERNEL_NUM,
                 fix_sigma=None, tile_size=None):
    """MMDLoss.forward with kernel_type='rbf'. source/target: [B, D] (equal shapes)."""
    assert source.shape == target.shape and source.ndim == 2, \
        "Pallas MMD kernel assumes equal-sized 2-D source/target"
    b, d = source.shape
    n = 2 * b

    total = jnp.concatenate([source, target], axis=0).astype(jnp.float32)
    # Mean-centering leaves every pairwise distance (hence the loss) unchanged
    # but keeps the norm-based closed forms well conditioned.
    total = total - jnp.mean(total, axis=0, keepdims=True)

    # bandwidth = sum_ij ||x_i - x_j||^2 / (n^2 - n) via the O(N*D) closed form
    #   sum_ij ||x_i - x_j||^2 = 2N sum_i ||x_i||^2 - 2 ||sum_i x_i||^2.
    if fix_sigma is not None:
        bandwidth = jnp.float32(fix_sigma)
    else:
        sum_sq = jnp.sum(total * total)
        colsum = jnp.sum(total, axis=0)
        bandwidth = (2.0 * n * sum_sq - 2.0 * jnp.sum(colsum * colsum)) / float(n * n - n)
    base_bw = bandwidth / (kernel_mul ** (kernel_num // 2))
    bw_list = base_bw * (kernel_mul ** jnp.arange(kernel_num, dtype=jnp.float32))
    neg_inv_bw = (-1.0 / bw_list).astype(jnp.float32)       # (kernel_num,) -> SMEM

    # Tile sizing: 128/256-multiples keep vregs, MXU tiles and stores dense.
    if tile_size is None:
        tile = 128 if n <= 384 else 256
    else:
        tile = max(_LANE, _round_up(int(tile_size), _LANE))
    n_pad = _round_up(n, tile)
    g = n_pad // tile

    # bf16 slab for the MXU; norms computed (f32 accumulate) from the SAME
    # bf16-rounded values so l2 is an exact distance between the bf16 points.
    slab = jnp.zeros((n_pad, d), jnp.bfloat16).at[:n].set(total.astype(jnp.bfloat16))
    slab_f32 = slab.astype(jnp.float32)
    norms = jnp.sum(slab_f32 * slab_f32, axis=1)            # (n_pad,)
    idx = jnp.arange(n_pad)
    sign = jnp.where(idx < b, 1.0, jnp.where(idx < n, -1.0, 0.0)).astype(jnp.float32)

    norm_row = norms.reshape(n_pad, 1)
    norm_col = norms.reshape(1, n_pad)
    sign_row = sign.reshape(n_pad, 1)
    sign_col = sign.reshape(1, n_pad)

    # Upper-triangle tile pairs (row-major so the row slab stays resident while
    # the column slab streams); split evenly across a length-2 "parallel" axis
    # so both v7x TensorCores get work.  Padded pair gets scale 0.
    pairs = [(i, j) for i in range(g) for j in range(i, g)]
    n_pairs = len(pairs)
    ppc = _cdiv(n_pairs, 2)                                  # pairs per core
    n_pairs_pad = 2 * ppc
    ri_h = np.zeros((n_pairs_pad,), np.int32)
    ci_h = np.zeros((n_pairs_pad,), np.int32)
    sc_h = np.zeros((n_pairs_pad,), np.int32)
    for p, (i, j) in enumerate(pairs):
        ri_h[p], ci_h[p], sc_h[p] = i, j, (1 if i == j else 2)

    kernel = functools.partial(
        _mmd_pair_kernel, pairs_per_core=ppc,
        kernel_mul=float(kernel_mul), kernel_num=int(kernel_num))

    row_map = lambda c, q, ri, ci, sc: (ri[c * ppc + q], 0)
    col_map = lambda c, q, ri, ci, sc: (ci[c * ppc + q], 0)
    ccol_map = lambda c, q, ri, ci, sc: (0, ci[c * ppc + q])
    out_map = lambda c, q, ri, ci, sc: (c * ppc + q, 0, 0)

    # VMEM guardrail: slabs (double-buffered, bf16, rows+cols) + tile intermediates.
    slab_bytes = 2 * 2 * tile * d * 2
    interm_bytes = 12 * tile * tile * 4
    vmem_limit = int(min(56 * 1024 * 1024,
                         max(32 * 1024 * 1024, 2 * (slab_bytes + interm_bytes))))

    cost = pl.CostEstimate(
        flops=int(n_pairs * (2 * tile * tile * d + 16 * tile * tile)),
        transcendentals=int(n_pairs * tile * tile),
        bytes_accessed=int(g * tile * d * 2 + n_pairs * tile * d * 2
                           + n_pairs_pad * 8 * 128 * 4),
    )

    partials = pl.pallas_call(
        kernel,
        out_shape=jax.ShapeDtypeStruct((n_pairs_pad, 8, 128), jnp.float32),
        grid_spec=pltpu.PrefetchScalarGridSpec(
            num_scalar_prefetch=3,
            grid=(2, ppc),
            in_specs=[
                pl.BlockSpec(memory_space=pltpu.MemorySpace.SMEM),   # -1/bw scalars
                pl.BlockSpec((tile, d), row_map),                    # row slab (bf16)
                pl.BlockSpec((tile, d), col_map),                    # col slab (bf16)
                pl.BlockSpec((tile, 1), row_map),                    # row signs
                pl.BlockSpec((1, tile), ccol_map),                   # col signs
                pl.BlockSpec((tile, 1), row_map),                    # row |x|^2
                pl.BlockSpec((1, tile), ccol_map),                   # col |x|^2
            ],
            out_specs=pl.BlockSpec((1, 8, 128), out_map),
        ),
        compiler_params=pltpu.CompilerParams(
            dimension_semantics=("parallel", "arbitrary"),
            vmem_limit_bytes=vmem_limit),
        cost_estimate=cost,
    )(jnp.asarray(ri_h), jnp.asarray(ci_h), jnp.asarray(sc_h),
      neg_inv_bw, slab, slab, sign_row, sign_col, norm_row, norm_col)

    # Quadrant means share the denominator b*b; the signed (and symmetry-scaled)
    # sum already carries the +/- pattern, so loss = signed total / b^2.
    return jnp.sum(partials) / float(b * b)


def mmd_loss_linear(source, target):
    """MMDLoss.forward with kernel_type='linear' (trivial O(D), plain JAX)."""
    delta = (jnp.mean(source.astype(jnp.float32), axis=0)
             - jnp.mean(target.astype(jnp.float32), axis=0))
    return jnp.dot(delta, delta)


def mmd_loss(source, target, kernel_type='rbf', kernel_mul=KERNEL_MUL,
             kernel_num=KERNEL_NUM, fix_sigma=None):
    if kernel_type == 'linear':
        return mmd_loss_linear(source, target)
    return mmd_loss_rbf(source, target, kernel_mul=kernel_mul,
                        kernel_num=kernel_num, fix_sigma=fix_sigma)


def mmd_loss_ref(source, target, kernel_mul=KERNEL_MUL, kernel_num=KERNEL_NUM):
    """Pure-JAX reference mirroring the PyTorch module exactly."""
    total = jnp.concatenate([source, target], axis=0).astype(jnp.float32)
    n = total.shape[0]
    diff = total[None, :, :] - total[:, None, :]
    l2 = jnp.sum(diff * diff, axis=2)
    bandwidth = jnp.sum(l2) / (n * n - n)
    bandwidth = bandwidth / (kernel_mul ** (kernel_num // 2))
    kernels = sum(
        jnp.exp(-l2 / (bandwidth * kernel_mul ** i)) for i in range(kernel_num)
    )
    b = source.shape[0]
    return (
        jnp.mean(kernels[:b, :b])
        + jnp.mean(kernels[b:, b:])
        - jnp.mean(kernels[:b, :b].T * 0 + kernels[:b, b:])
        - jnp.mean(kernels[b:, :b])
    )


if __name__ == "__main__":
    key = jax.random.PRNGKey(0)
    k1, k2, k3, k4 = jax.random.split(key, 4)

    # Case 1: small, single tile with padding and an in-tile quadrant boundary
    # (B=8, D=32 -> N=16, tile=128, g=1).
    B, D = 8, 32
    src = jax.random.normal(k1, (B, D), dtype=jnp.float32)
    tgt = jax.random.normal(k2, (B, D), dtype=jnp.float32) + 0.5
    loss = jax.block_until_ready(mmd_loss_rbf(src, tgt))
    ref = mmd_loss_ref(src, tgt)
    assert jnp.allclose(loss, ref, rtol=2e-3, atol=2e-4), (loss, ref)

    # Case 2: multi-tile triangular grid (B=70 -> N=140, tile=128 -> N_pad=256,
    # g=2, pairs {(0,0),(0,1),(1,1)} + one padded pair), off-diagonal doubling,
    # row padding, bf16 slabs.
    B2, D2 = 70, 96
    src2 = jax.random.normal(k3, (B2, D2), dtype=jnp.float32)
    tgt2 = jax.random.normal(k4, (B2, D2), dtype=jnp.float32) + 0.25
    loss2 = jax.block_until_ready(mmd_loss_rbf(src2, tgt2))
    ref2 = mmd_loss_ref(src2, tgt2)
    assert jnp.allclose(loss2, ref2, rtol=2e-3, atol=2e-4), (loss2, ref2)

    # Case 3: same data, forced tile=256 -> single 256x256 tile; exercises the
    # multi-lane-group reduction path.
    loss3 = jax.block_until_ready(mmd_loss_rbf(src2, tgt2, tile_size=256))
    assert jnp.allclose(loss3, ref2, rtol=2e-3, atol=2e-4), (loss3, ref2)

    print("KERNEL_OK")
</pallas_src>

<mosaic_0001>
module attributes {stable_mosaic.version = 11 : i64} {
  func.func @_mmd_pair_kernel(%arg0: i32, %arg1: i32, %arg2: memref<2xi32, #tpu.memory_space<smem>>, %arg3: memref<2xi32, #tpu.memory_space<smem>>, %arg4: memref<2xi32, #tpu.memory_space<smem>>, %arg5: memref<5xf32, #tpu.memory_space<smem>>, %arg6: memref<128x32xbf16, #tpu.memory_space<vmem>>, %arg7: memref<128x32xbf16, #tpu.memory_space<vmem>>, %arg8: memref<128x1xf32, #tpu.memory_space<vmem>>, %arg9: memref<1x128xf32, #tpu.memory_space<vmem>>, %arg10: memref<128x1xf32, #tpu.memory_space<vmem>>, %arg11: memref<1x128xf32, #tpu.memory_space<vmem>>, %arg12: memref<1x8x128xf32, #tpu.memory_space<vmem>>) attributes {dimension_semantics = [#tpu.dimension_semantics<parallel>, #tpu.dimension_semantics<arbitrary>], iteration_bounds = array<i64: 2, 1>, scalar_prefetch = 3 : i64, scratch_operands = 0 : i64, tpu.core_type = #tpu.core_type<tc>, window_params = [{transform_indices = @transform_0, window_bounds = array<i64: 5>}, {transform_indices = @transform_1, window_bounds = array<i64: 128, 32>}, {transform_indices = @transform_2, window_bounds = array<i64: 128, 32>}, {transform_indices = @transform_3, window_bounds = array<i64: 128, 1>}, {transform_indices = @transform_4, window_bounds = array<i64: 1, 128>}, {transform_indices = @transform_5, window_bounds = array<i64: 128, 1>}, {transform_indices = @transform_6, window_bounds = array<i64: 1, 128>}, {transform_indices = @transform_7, window_bounds = array<i64: 1, 8, 128>}]} {
    %c1_i32 = arith.constant 1 : i32
    %0 = arith.muli %arg0, %c1_i32 : i32
    %1 = arith.addi %0, %arg1 : i32
    %2 = arith.index_cast %1 : i32 to index
    %3 = memref.load %arg4[%2] : memref<2xi32, #tpu.memory_space<smem>>
    %4 = arith.sitofp %3 : i32 to f32
    %c0 = arith.constant 0 : index
    %c0_0 = arith.constant 0 : index
    %5 = vector.load %arg6[%c0, %c0_0] : memref<128x32xbf16, #tpu.memory_space<vmem>>, vector<128x32xbf16>
    %c0_1 = arith.constant 0 : index
    %c0_2 = arith.constant 0 : index
    %6 = vector.load %arg7[%c0_1, %c0_2] : memref<128x32xbf16, #tpu.memory_space<vmem>>, vector<128x32xbf16>
    %cst = arith.constant dense<0.000000e+00> : vector<128x128xf32>
    %7 = tpu.matmul %5, %6, %cst {dimension_numbers = #tpu.dot_dimension_numbers<[1], [1], [0], [0], [0, 0, 1, 0], [], []>} : vector<128x32xbf16>, vector<128x32xbf16>, vector<128x128xf32> -> vector<128x128xf32>
    %c0_3 = arith.constant 0 : index
    %c0_4 = arith.constant 0 : index
    %8 = vector.load %arg10[%c0_3, %c0_4] : memref<128x1xf32, #tpu.memory_space<vmem>>, vector<128x1xf32>
    %c0_5 = arith.constant 0 : index
    %c0_6 = arith.constant 0 : index
    %9 = vector.load %arg11[%c0_5, %c0_6] : memref<1x128xf32, #tpu.memory_space<vmem>>, vector<1x128xf32>
    %10 = vector.broadcast %8 : vector<128x1xf32> to vector<128x128xf32>
    %11 = vector.broadcast %9 : vector<1x128xf32> to vector<128x128xf32>
    %12 = arith.addf %10, %11 : vector<128x128xf32>
    %cst_7 = arith.constant 2.000000e+00 : f32
    %13 = vector.broadcast %cst_7 : f32 to vector<128x128xf32>
    %14 = arith.mulf %13, %7 : vector<128x128xf32>
    %15 = arith.subf %12, %14 : vector<128x128xf32>
    %cst_8 = arith.constant 0.000000e+00 : f32
    %16 = vector.broadcast %cst_8 : f32 to vector<128x128xf32>
    %17 = arith.maximumf %15, %16 : vector<128x128xf32>
    %c4 = arith.constant 4 : index
    %18 = memref.load %arg5[%c4] : memref<5xf32, #tpu.memory_space<smem>>
    %19 = vector.broadcast %18 : f32 to vector<128x128xf32>
    %20 = arith.mulf %17, %19 : vector<128x128xf32>
    %21 = math.exp %20 : vector<128x128xf32>
    %22 = arith.mulf %21, %21 : vector<128x128xf32>
    %23 = arith.addf %21, %22 : vector<128x128xf32>
    %24 = arith.mulf %22, %22 : vector<128x128xf32>
    %25 = arith.addf %23, %24 : vector<128x128xf32>
    %26 = arith.mulf %24, %24 : vector<128x128xf32>
    %27 = arith.addf %25, %26 : vector<128x128xf32>
    %28 = arith.mulf %26, %26 : vector<128x128xf32>
    %29 = arith.addf %27, %28 : vector<128x128xf32>
    %c0_9 = arith.constant 0 : index
    %c0_10 = arith.constant 0 : index
    %30 = vector.load %arg9[%c0_9, %c0_10] : memref<1x128xf32, #tpu.memory_space<vmem>>, vector<1x128xf32>
    %31 = vector.broadcast %30 : vector<1x128xf32> to vector<128x128xf32>
    %32 = arith.mulf %29, %31 : vector<128x128xf32>
    %c0_11 = arith.constant 0 : index
    %c0_12 = arith.constant 0 : index
    %33 = vector.load %arg8[%c0_11, %c0_12] : memref<128x1xf32, #tpu.memory_space<vmem>>, vector<128x1xf32>
    %34 = vector.broadcast %4 : f32 to vector<128x1xf32>
    %35 = arith.mulf %33, %34 : vector<128x1xf32>
    %36 = vector.broadcast %35 : vector<128x1xf32> to vector<128x128xf32>
    %37 = arith.mulf %32, %36 : vector<128x128xf32>
    %38 = vector.extract_strided_slice %37 {offsets = [0, 0], sizes = [8, 128], strides = [1, 1]} : vector<128x128xf32> to vector<8x128xf32>
    %39 = vector.extract_strided_slice %37 {offsets = [8, 0], sizes = [8, 128], strides = [1, 1]} : vector<128x128xf32> to vector<8x128xf32>
    %40 = arith.addf %38, %39 : vector<8x128xf32>
    %41 = vector.extract_strided_slice %37 {offsets = [16, 0], sizes = [8, 128], strides = [1, 1]} : vector<128x128xf32> to vector<8x128xf32>
    %42 = arith.addf %40, %41 : vector<8x128xf32>
    %43 = vector.extract_strided_slice %37 {offsets = [24, 0], sizes = [8, 128], strides = [1, 1]} : vector<128x128xf32> to vector<8x128xf32>
    %44 = arith.addf %42, %43 : vector<8x128xf32>
    %45 = vector.extract_strided_slice %37 {offsets = [32, 0], sizes = [8, 128], strides = [1, 1]} : vector<128x128xf32> to vector<8x128xf32>
    %46 = arith.addf %44, %45 : vector<8x128xf32>
    %47 = vector.extract_strided_slice %37 {offsets = [40, 0], sizes = [8, 128], strides = [1, 1]} : vector<128x128xf32> to vector<8x128xf32>
    %48 = arith.addf %46, %47 : vector<8x128xf32>
    %49 = vector.extract_strided_slice %37 {offsets = [48, 0], sizes = [8, 128], strides = [1, 1]} : vector<128x128xf32> to vector<8x128xf32>
    %50 = arith.addf %48, %49 : vector<8x128xf32>
    %51 = vector.extract_strided_slice %37 {offsets = [56, 0], sizes = [8, 128], strides = [1, 1]} : vector<128x128xf32> to vector<8x128xf32>
    %52 = arith.addf %50, %51 : vector<8x128xf32>
    %53 = vector.extract_strided_slice %37 {offsets = [64, 0], sizes = [8, 128], strides = [1, 1]} : vector<128x128xf32> to vector<8x128xf32>
    %54 = arith.addf %52, %53 : vector<8x128xf32>
    %55 = vector.extract_strided_slice %37 {offsets = [72, 0], sizes = [8, 128], strides = [1, 1]} : vector<128x128xf32> to vector<8x128xf32>
    %56 = arith.addf %54, %55 : vector<8x128xf32>
    %57 = vector.extract_strided_slice %37 {offsets = [80, 0], sizes = [8, 128], strides = [1, 1]} : vector<128x128xf32> to vector<8x128xf32>
    %58 = arith.addf %56, %57 : vector<8x128xf32>
    %59 = vector.extract_strided_slice %37 {offsets = [88, 0], sizes = [8, 128], strides = [1, 1]} : vector<128x128xf32> to vector<8x128xf32>
    %60 = arith.addf %58, %59 : vector<8x128xf32>
    %61 = vector.extract_strided_slice %37 {offsets = [96, 0], sizes = [8, 128], strides = [1, 1]} : vector<128x128xf32> to vector<8x128xf32>
    %62 = arith.addf %60, %61 : vector<8x128xf32>
    %63 = vector.extract_strided_slice %37 {offsets = [104, 0], sizes = [8, 128], strides = [1, 1]} : vector<128x128xf32> to vector<8x128xf32>
    %64 = arith.addf %62, %63 : vector<8x128xf32>
    %65 = vector.extract_strided_slice %37 {offsets = [112, 0], sizes = [8, 128], strides = [1, 1]} : vector<128x128xf32> to vector<8x128xf32>
    %66 = arith.addf %64, %65 : vector<8x128xf32>
    %67 = vector.extract_strided_slice %37 {offsets = [120, 0], sizes = [8, 128], strides = [1, 1]} : vector<128x128xf32> to vector<8x128xf32>
    %68 = arith.addf %66, %67 : vector<8x128xf32>
    %c0_13 = arith.constant 0 : index
    %c0_14 = arith.constant 0 : index
    %c0_15 = arith.constant 0 : index
    %69 = vector.load %arg12[%c0_13, %c0_14, %c0_15] : memref<1x8x128xf32, #tpu.memory_space<vmem>>, vector<1x8x128xf32>
    %70 = vector.shape_cast %69 : vector<1x8x128xf32> to vector<8x128xf32>
    %71 = vector.shape_cast %68 : vector<8x128xf32> to vector<1x8x128xf32>
    tpu.vector_store %arg12[%c0_13, %c0_14, %c0_15], %71 {strides = array<i32>} : memref<1x8x128xf32, #tpu.memory_space<vmem>>, vector<1x8x128xf32>,
    return
  }
  func.func @transform_0(%arg0: i32, %arg1: i32, %arg2: memref<2xi32, #tpu.memory_space<smem>>, %arg3: memref<2xi32, #tpu.memory_space<smem>>, %arg4: memref<2xi32, #tpu.memory_space<smem>>) -> i32 {
    %c0_i32 = arith.constant 0 : i32
    %c0_i32_0 = arith.constant 0 : i32
    return %c0_i32 : i32
  }
  func.func @transform_1(%arg0: i32, %arg1: i32, %arg2: memref<2xi32, #tpu.memory_space<smem>>, %arg3: memref<2xi32, #tpu.memory_space<smem>>, %arg4: memref<2xi32, #tpu.memory_space<smem>>) -> (i32, i32) {
    %c1_i32 = arith.constant 1 : i32
    %0 = arith.muli %arg0, %c1_i32 : i32
    %1 = arith.addi %0, %arg1 : i32
    %2 = arith.index_cast %1 : i32 to index
    %3 = memref.load %arg2[%2] : memref<2xi32, #tpu.memory_space<smem>>
    %c0_i32 = arith.constant 0 : i32
    %c0_i32_0 = arith.constant 0 : i32
    return %3, %c0_i32 : i32, i32
  }
  func.func @transform_2(%arg0: i32, %arg1: i32, %arg2: memref<2xi32, #tpu.memory_space<smem>>, %arg3: memref<2xi32, #tpu.memory_space<smem>>, %arg4: memref<2xi32, #tpu.memory_space<smem>>) -> (i32, i32) {
    %c1_i32 = arith.constant 1 : i32
    %0 = arith.muli %arg0, %c1_i32 : i32
    %1 = arith.addi %0, %arg1 : i32
    %2 = arith.index_cast %1 : i32 to index
    %3 = memref.load %arg3[%2] : memref<2xi32, #tpu.memory_space<smem>>
    %c0_i32 = arith.constant 0 : i32
    %c0_i32_0 = arith.constant 0 : i32
    return %3, %c0_i32 : i32, i32
  }
  func.func @transform_3(%arg0: i32, %arg1: i32, %arg2: memref<2xi32, #tpu.memory_space<smem>>, %arg3: memref<2xi32, #tpu.memory_space<smem>>, %arg4: memref<2xi32, #tpu.memory_space<smem>>) -> (i32, i32) {
    %c1_i32 = arith.constant 1 : i32
    %0 = arith.muli %arg0, %c1_i32 : i32
    %1 = arith.addi %0, %arg1 : i32
    %2 = arith.index_cast %1 : i32 to index
    %3 = memref.load %arg2[%2] : memref<2xi32, #tpu.memory_space<smem>>
    %c0_i32 = arith.constant 0 : i32
    %c0_i32_0 = arith.constant 0 : i32
    return %3, %c0_i32 : i32, i32
  }
  func.func @transform_4(%arg0: i32, %arg1: i32, %arg2: memref<2xi32, #tpu.memory_space<smem>>, %arg3: memref<2xi32, #tpu.memory_space<smem>>, %arg4: memref<2xi32, #tpu.memory_space<smem>>) -> (i32, i32) {
    %c1_i32 = arith.constant 1 : i32
    %0 = arith.muli %arg0, %c1_i32 : i32
    %1 = arith.addi %0, %arg1 : i32
    %2 = arith.index_cast %1 : i32 to index
    %3 = memref.load %arg3[%2] : memref<2xi32, #tpu.memory_space<smem>>
    %c0_i32 = arith.constant 0 : i32
    %c0_i32_0 = arith.constant 0 : i32
    return %c0_i32, %3 : i32, i32
  }
  func.func @transform_5(%arg0: i32, %arg1: i32, %arg2: memref<2xi32, #tpu.memory_space<smem>>, %arg3: memref<2xi32, #tpu.memory_space<smem>>, %arg4: memref<2xi32, #tpu.memory_space<smem>>) -> (i32, i32) {
    %c1_i32 = arith.constant 1 : i32
    %0 = arith.muli %arg0, %c1_i32 : i32
    %1 = arith.addi %0, %arg1 : i32
    %2 = arith.index_cast %1 : i32 to index
    %3 = memref.load %arg2[%2] : memref<2xi32, #tpu.memory_space<smem>>
    %c0_i32 = arith.constant 0 : i32
    %c0_i32_0 = arith.constant 0 : i32
    return %3, %c0_i32 : i32, i32
  }
  func.func @transform_6(%arg0: i32, %arg1: i32, %arg2: memref<2xi32, #tpu.memory_space<smem>>, %arg3: memref<2xi32, #tpu.memory_space<smem>>, %arg4: memref<2xi32, #tpu.memory_space<smem>>) -> (i32, i32) {
    %c1_i32 = arith.constant 1 : i32
    %0 = arith.muli %arg0, %c1_i32 : i32
    %1 = arith.addi %0, %arg1 : i32
    %2 = arith.index_cast %1 : i32 to index
    %3 = memref.load %arg3[%2] : memref<2xi32, #tpu.memory_space<smem>>
    %c0_i32 = arith.constant 0 : i32
    %c0_i32_0 = arith.constant 0 : i32
    return %c0_i32, %3 : i32, i32
  }
  func.func @transform_7(%arg0: i32, %arg1: i32, %arg2: memref<2xi32, #tpu.memory_space<smem>>, %arg3: memref<2xi32, #tpu.memory_space<smem>>, %arg4: memref<2xi32, #tpu.memory_space<smem>>) -> (i32, i32, i32) {
    %c1_i32 = arith.constant 1 : i32
    %0 = arith.muli %arg0, %c1_i32 : i32
    %1 = arith.addi %0, %arg1 : i32
    %c0_i32 = arith.constant 0 : i32
    %c0_i32_0 = arith.constant 0 : i32
    %c0_i32_1 = arith.constant 0 : i32
    return %1, %c0_i32, %c0_i32_0 : i32, i32, i32
  }
}

</mosaic_0001>

<llo_original>
// kernel: tpu_custom_call.1
$region0: #{tpu_custom_call.1}
  #allocation0 [shape = 'u32[]', space=smem, size = 0x4, offset = 0x4, fixed_abs, tag = 'smem constant byte address 0x4 - core index']
  #allocation1 [shape = 'u32[72,128]{1,0:T(1,128)}', space=vmem, size = 0x9000, scoped, tag = 'internal scratch']
  #allocation2 [shape = 's32[1]{0}', space=sflag, size = 0x4, scoped, tag = 'scoped memory for tpu_custom_call.1']
  #allocation3 [shape = 'u8[512]{0}', space=smem, size = 0x200, scoped, tag = 'prefetched SMEM operand 0']
  #allocation4 [shape = 'u8[512]{0}', space=smem, size = 0x200, scoped, tag = 'prefetched SMEM operand 1']
  #allocation5 [shape = 'u8[512]{0}', space=smem, size = 0x200, scoped, tag = 'prefetched SMEM operand 2']
  %s0 = inlined_call_operand.vmem [shape: s32[2], index: 0, kind: input, shape index: {}]
  %s1 = inlined_call_operand.vmem [shape: s32[2], index: 1, kind: input, shape index: {}]
  %s2 = inlined_call_operand.vmem [shape: s32[2], index: 2, kind: input, shape index: {}]
  %s3 = inlined_call_operand.vmem [shape: f32[5], index: 3, kind: input, shape index: {}]
  %s4 = inlined_call_operand.vmem [shape: bf16[128,32], index: 4, kind: input, shape index: {}]
  %s5 = inlined_call_operand.vmem [shape: bf16[128,32], index: 5, kind: input, shape index: {}]
  %s6 = inlined_call_operand.vmem [shape: f32[128,1], index: 6, kind: input, shape index: {}]
  %s7 = inlined_call_operand.vmem [shape: f32[1,128], index: 7, kind: input, shape index: {}]
  %s8 = inlined_call_operand.vmem [shape: f32[128,1], index: 8, kind: input, shape index: {}]
  %s9 = inlined_call_operand.vmem [shape: f32[1,128], index: 9, kind: input, shape index: {}]
  %s10 = inlined_call_operand.hbm [shape: f32[2,8,128], index: 10, kind: output, shape index: {}]
  %s11 = sld [smem:[#allocation0]]
  $region65: #{tpu_custom_call.1} parent=0
    _
  %s13 = ssub.s32 1, %s11
  %s14 = scalar_select 0, %s13, %s11
  %s16 = sshll.u32 %s0, 4
  %s17 = int_to_ptr.vmem [resolvable:$true] %s16
  %19 = dma.vmem_to_smem %s17, 16, [#allocation3], [#allocation2]
  %s21 = sshll.u32 %s1, 4
  %s22 = int_to_ptr.vmem [resolvable:$true] %s21
  %24 = dma.vmem_to_smem %s22, 16, [#allocation4], [#allocation2]
  %s26 = sshll.u32 %s2, 4
  %s27 = int_to_ptr.vmem [resolvable:$true] %s26
  %29 = dma.vmem_to_smem %s27, 16, [#allocation5], [#allocation2]
  %31 = dma.done [#allocation2], 48
  %32 = sfence
  $region1: #{tpu_custom_call.1} parent=0
    #allocation6 [shape = 'u8[512]{0}', space=smem, size = 0x200, scoped, tag = 'input window, operand 3, single buffered']
    #allocation7 [shape = 's32[2]{0}', space=sflag, size = 0x8, scoped, tag = 'scoped memory for tpu_custom_call.1']
    #allocation8 [shape = 's32[2]{0}', space=sflag, size = 0x8, scoped, tag = 'scoped memory for tpu_custom_call.1']
    #allocation9 [shape = 'u8[8192]{0}', space=vmem, size = 0x2000, scoped, tag = 'output window, operand 0']
    %33 = vsyncpa [#allocation8], 0
    %34 = vsyncpa [#allocation7], 0
    %s35 = scalar_lea.sflag [#allocation7], 1
    %36 = vsyncpa %s35, 0
    loop: start=0, step=1, limit=4
    $region2: #{tpu_custom_call.1} parent=1 // loop_pre_header
      _
    $region3: #{tpu_custom_call.1} parent=1 // loop_header
      %s38 = sphi 0, %s42
      %p39 = scmp.ge.s32.totalorder %s38, 4
      %s45 = sphi 0, %s57
      %s46 = sphi 0, %s53
      %s47 = sphi 0, %s45
      %s48 = sphi 0, %s46
      %s49 = sphi 0, %s47
      %s50 = sphi 0, %s48
      %s58 = sphi 0, %s58
      %s60 = sphi 0, %s58
      %s61 = sphi 0, %s60
      %s75 = sphi 0, %s61
      %s85 = sphi 0, %s87
      %s88 = sphi 0, %s85
      %s89 = sphi 0, %s88
      %s105 = sphi 0, %s89
      %s115 = sphi 0, %s117
      %s118 = sphi 0, %s115
      %s119 = sphi 0, %s118
      %s135 = sphi 0, %s119
      %s145 = sphi 0, %s147
      %s148 = sphi 0, %s145
      %s149 = sphi 0, %s148
      %s165 = sphi 0, %s149
      %s175 = sphi 0, %s177
      %s178 = sphi 0, %s175
      %s179 = sphi 0, %s178
      %s195 = sphi 0, %s179
      %s205 = sphi 0, %s207
      %s208 = sphi 0, %s205
      %s209 = sphi 0, %s208
      %s225 = sphi 0, %s209
      %s235 = sphi 0, %s237
      %s238 = sphi 0, %s235
      %s239 = sphi 0, %s238
      %s255 = sphi 0, %s239
      %s263 = sphi 0, %s265
      %s266 = sphi 0, %s263
      %s267 = sphi 0, %s266
      %s283 = sphi 0, %s267
    $region4: #{tpu_custom_call.1} parent=1 // loop_header_branch
      %41 = sbr.rel (%p39) target = $region8
    $region5: #{tpu_custom_call.1} parent=1 // loop_body
      %s43 = ssub.s32 %s38, 1
      %s44 = ssub.s32 %s38, 2
      %s51 = sadd.s32 1, %s46
      %p52 = scmp.ge.s32.totalorder %s51, 1
      %s53 = scalar_select %p52, 0, %s51
      %s54 = sadd.s32 1, %s45
      %s55 = scalar_select %p52, %s54, %s45
      %p56 = scmp.ge.s32.totalorder %s55, 2
      %s57 = scalar_select %p56, 0, %s55
      %s59 = sadd.s32 %s58, 1
      %p62 = scmp.eq.s32.totalorder %s38, 1
      %p63 = scmp.ne.s32.totalorder %s58, %s60
      %p64 = scmp.eq.s32.totalorder %s38, 0
      %p65 = por %p63, %p64
      %p66 = scmp.ne.s32.totalorder %s58, %s60
      %p67 = scmp.eq.s32.totalorder %s43, 1
      %p68 = por %p66, %p67
      %p69 = scmp.ne.s32.totalorder %s60, %s61
      %p70 = scmp.eq.s32.totalorder %s43, 0
      %p71 = por %p69, %p70
      %p72 = scmp.ne.s32.totalorder %s60, %s61
      %p73 = scmp.eq.s32.totalorder %s44, 1
      %p74 = por %p72, %p73
      %p76 = scmp.ne.s32.totalorder %s61, %s75
      %p77 = scmp.eq.s32.totalorder %s44, 0
      %p78 = por %p76, %p77
      %s79 = sadd.s32 %s45, %s46
      %s80 = sld [smem:[#allocation3 + %s79]]
      %s81 = sadd.s32 %s57, %s53
      %s82 = sld [smem:[#allocation3 + %s81]]
      %s83 = ssub.s32 %s80, %s82
      %p84 = scmp.eq.s32.totalorder %s83, 0
      %s86 = sadd.s32 %s85, 1
      %s87 = scalar_select %p84, %s85, %s86
      %p90 = pneg %p84
      %p91 = scmp.eq.s32.totalorder %s38, 1
      %p92 = por %p90, %p91
      %p93 = scmp.ne.s32.totalorder %s85, %s88
      %p94 = scmp.eq.s32.totalorder %s38, 0
      %p95 = por %p93, %p94
      %p96 = scmp.ne.s32.totalorder %s85, %s88
      %p97 = scmp.eq.s32.totalorder %s43, 1
      %p98 = por %p96, %p97
      %p99 = scmp.ne.s32.totalorder %s88, %s89
      %p100 = scmp.eq.s32.totalorder %s43, 0
      %p101 = por %p99, %p100
      %p102 = scmp.ne.s32.totalorder %s88, %s89
      %p103 = scmp.eq.s32.totalorder %s44, 1
      %p104 = por %p102, %p103
      %p106 = scmp.ne.s32.totalorder %s89, %s105
      %p107 = scmp.eq.s32.totalorder %s44, 0
      %p108 = por %p106, %p107
      %s109 = sadd.s32 %s45, %s46
      %s110 = sld [smem:[#allocation4 + %s109]]
      %s111 = sadd.s32 %s57, %s53
      %s112 = sld [smem:[#allocation4 + %s111]]
      %s113 = ssub.s32 %s110, %s112
      %p114 = scmp.eq.s32.totalorder %s113, 0
      %s116 = sadd.s32 %s115, 1
      %s117 = scalar_select %p114, %s115, %s116
      %p120 = pneg %p114
      %p121 = scmp.eq.s32.totalorder %s38, 1
      %p122 = por %p120, %p121
      %p123 = scmp.ne.s32.totalorder %s115, %s118
      %p124 = scmp.eq.s32.totalorder %s38, 0
      %p125 = por %p123, %p124
      %p126 = scmp.ne.s32.totalorder %s115, %s118
      %p127 = scmp.eq.s32.totalorder %s43, 1
      %p128 = por %p126, %p127
      %p129 = scmp.ne.s32.totalorder %s118, %s119
      %p130 = scmp.eq.s32.totalorder %s43, 0
      %p131 = por %p129, %p130
      %p132 = scmp.ne.s32.totalorder %s118, %s119
      %p133 = scmp.eq.s32.totalorder %s44, 1
      %p134 = por %p132, %p133
      %p136 = scmp.ne.s32.totalorder %s119, %s135
      %p137 = scmp.eq.s32.totalorder %s44, 0
      %p138 = por %p136, %p137
      %s139 = sadd.s32 %s45, %s46
      %s140 = sld [smem:[#allocation3 + %s139]]
      %s141 = sadd.s32 %s57, %s53
      %s142 = sld [smem:[#allocation3 + %s141]]
      %s143 = ssub.s32 %s140, %s142
      %p144 = scmp.eq.s32.totalorder %s143, 0
      %s146 = sadd.s32 %s145, 1
      %s147 = scalar_select %p144, %s145, %s146
      %p150 = pneg %p144
      %p151 = scmp.eq.s32.totalorder %s38, 1
      %p152 = por %p150, %p151
      %p153 = scmp.ne.s32.totalorder %s145, %s148
      %p154 = scmp.eq.s32.totalorder %s38, 0
      %p155 = por %p153, %p154
      %p156 = scmp.ne.s32.totalorder %s145, %s148
      %p157 = scmp.eq.s32.totalorder %s43, 1
      %p158 = por %p156, %p157
      %p159 = scmp.ne.s32.totalorder %s148, %s149
      %p160 = scmp.eq.s32.totalorder %s43, 0
      %p161 = por %p159, %p160
      %p162 = scmp.ne.s32.totalorder %s148, %s149
      %p163 = scmp.eq.s32.totalorder %s44, 1
      %p164 = por %p162, %p163
      %p166 = scmp.ne.s32.totalorder %s149, %s165
      %p167 = scmp.eq.s32.totalorder %s44, 0
      %p168 = por %p166, %p167
      %s169 = sadd.s32 %s45, %s46
      %s170 = sld [smem:[#allocation4 + %s169]]
      %s171 = sadd.s32 %s57, %s53
      %s172 = sld [smem:[#allocation4 + %s171]]
      %s173 = ssub.s32 %s170, %s172
      %p174 = scmp.eq.s32.totalorder %s173, 0
      %s176 = sadd.s32 %s175, 1
      %s177 = scalar_select %p174, %s175, %s176
      %p180 = pneg %p174
      %p181 = scmp.eq.s32.totalorder %s38, 1
      %p182 = por %p180, %p181
      %p183 = scmp.ne.s32.totalorder %s175, %s178
      %p184 = scmp.eq.s32.totalorder %s38, 0
      %p185 = por %p183, %p184
      %p186 = scmp.ne.s32.totalorder %s175, %s178
      %p187 = scmp.eq.s32.totalorder %s43, 1
      %p188 = por %p186, %p187
      %p189 = scmp.ne.s32.totalorder %s178, %s179
      %p190 = scmp.eq.s32.totalorder %s43, 0
      %p191 = por %p189, %p190
      %p192 = scmp.ne.s32.totalorder %s178, %s179
      %p193 = scmp.eq.s32.totalorder %s44, 1
      %p194 = por %p192, %p193
      %p196 = scmp.ne.s32.totalorder %s179, %s195
      %p197 = scmp.eq.s32.totalorder %s44, 0
      %p198 = por %p196, %p197
      %s199 = sadd.s32 %s45, %s46
      %s200 = sld [smem:[#allocation3 + %s199]]
      %s201 = sadd.s32 %s57, %s53
      %s202 = sld [smem:[#allocation3 + %s201]]
      %s203 = ssub.s32 %s200, %s202
      %p204 = scmp.eq.s32.totalorder %s203, 0
      %s206 = sadd.s32 %s205, 1
      %s207 = scalar_select %p204, %s205, %s206
      %p210 = pneg %p204
      %p211 = scmp.eq.s32.totalorder %s38, 1
      %p212 = por %p210, %p211
      %p213 = scmp.ne.s32.totalorder %s205, %s208
      %p214 = scmp.eq.s32.totalorder %s38, 0
      %p215 = por %p213, %p214
      %p216 = scmp.ne.s32.totalorder %s205, %s208
      %p217 = scmp.eq.s32.totalorder %s43, 1
      %p218 = por %p216, %p217
      %p219 = scmp.ne.s32.totalorder %s208, %s209
      %p220 = scmp.eq.s32.totalorder %s43, 0
      %p221 = por %p219, %p220
      %p222 = scmp.ne.s32.totalorder %s208, %s209
      %p223 = scmp.eq.s32.totalorder %s44, 1
      %p224 = por %p222, %p223
      %p226 = scmp.ne.s32.totalorder %s209, %s225
      %p227 = scmp.eq.s32.totalorder %s44, 0
      %p228 = por %p226, %p227
      %s229 = sadd.s32 %s45, %s46
      %s230 = sld [smem:[#allocation4 + %s229]]
      %s231 = sadd.s32 %s57, %s53
      %s232 = sld [smem:[#allocation4 + %s231]]
      %s233 = ssub.s32 %s230, %s232
      %p234 = scmp.eq.s32.totalorder %s233, 0
      %s236 = sadd.s32 %s235, 1
      %s237 = scalar_select %p234, %s235, %s236
      %p240 = pneg %p234
      %p241 = scmp.eq.s32.totalorder %s38, 1
      %p242 = por %p240, %p241
      %p243 = scmp.ne.s32.totalorder %s235, %s238
      %p244 = scmp.eq.s32.totalorder %s38, 0
      %p245 = por %p243, %p244
      %p246 = scmp.ne.s32.totalorder %s235, %s238
      %p247 = scmp.eq.s32.totalorder %s43, 1
      %p248 = por %p246, %p247
      %p249 = scmp.ne.s32.totalorder %s238, %s239
      %p250 = scmp.eq.s32.totalorder %s43, 0
      %p251 = por %p249, %p250
      %p252 = scmp.ne.s32.totalorder %s238, %s239
      %p253 = scmp.eq.s32.totalorder %s44, 1
      %p254 = por %p252, %p253
      %p256 = scmp.ne.s32.totalorder %s239, %s255
      %p257 = scmp.eq.s32.totalorder %s44, 0
      %p258 = por %p256, %p257
      %s259 = sadd.s32 %s45, %s46
      %s260 = sadd.s32 %s57, %s53
      %s261 = ssub.s32 %s259, %s260
      %p262 = scmp.eq.s32.totalorder %s261, 0
      %s264 = sadd.s32 %s263, 1
      %s265 = scalar_select %p262, %s263, %s264
      %p268 = pneg %p262
      %p269 = scmp.eq.s32.totalorder %s38, 1
      %p270 = por %p268, %p269
      %p271 = scmp.ne.s32.totalorder %s263, %s266
      %p272 = scmp.eq.s32.totalorder %s38, 0
      %p273 = por %p271, %p272
      %p274 = scmp.ne.s32.totalorder %s263, %s266
      %p275 = scmp.eq.s32.totalorder %s43, 1
      %p276 = por %p274, %p275
      %p277 = scmp.ne.s32.totalorder %s266, %s267
      %p278 = scmp.eq.s32.totalorder %s43, 0
      %p279 = por %p277, %p278
      %p280 = scmp.ne.s32.totalorder %s266, %s267
      %p281 = scmp.eq.s32.totalorder %s44, 1
      %p282 = por %p280, %p281
      %p284 = scmp.ne.s32.totalorder %s267, %s283
      %p285 = scmp.eq.s32.totalorder %s44, 0
      %p286 = por %p284, %p285
      %p287 = scmp.le.s32.totalorder 1, %s38
      %p288 = scmp.lt.s32.totalorder %s38, 3
      %p289 = pnand %p287, %p288
      %p290 = pneg %p289
      // Predicated region
      $region9: #{tpu_custom_call.1} parent=5 // pred_check
        _
      $region10: #{tpu_custom_call.1} parent=5 // pred_check_branch
        %292 = sbr.rel (%p289) target = $region12
      $region11: #{tpu_custom_call.1} parent=5 // pred_region
        %s293 = ssub.s32 %s38, 1
        // Predicated region
        $region13: #{tpu_custom_call.1} parent=11 // pred_check
          %p294 = pneg %p71
        $region14: #{tpu_custom_call.1} parent=11 // pred_check_branch
          %296 = sbr.rel (%p294) target = $region16
        $region15: #{tpu_custom_call.1} parent=11 // pred_region
          %298 = vsyncadd [#allocation8], 0
          %s300 = sshll.u32 %s3, 4
          %s301 = int_to_ptr.vmem [resolvable:$true] %s300
          %303 = dma.vmem_to_smem %s301, 16, [#allocation6], [#allocation8]
        $region16: #{tpu_custom_call.1} parent=11 // pred_fallthru
          _
      $region12: #{tpu_custom_call.1} parent=5 // pred_fallthru
        _
      %p304 = scmp.lt.s32.totalorder %s38, 2
      // Predicated region
      $region17: #{tpu_custom_call.1} parent=5 // pred_check
        %p305 = pneg %p304
      $region18: #{tpu_custom_call.1} parent=5 // pred_check_branch
        %307 = sbr.rel (%p305) target = $region20
      $region19: #{tpu_custom_call.1} parent=5 // pred_region
        // Predicated region
        $region21: #{tpu_custom_call.1} parent=19 // pred_check
          %p308 = pneg %p95
        $region22: #{tpu_custom_call.1} parent=19 // pred_check_branch
          %310 = sbr.rel (%p308) target = $region24
        $region23: #{tpu_custom_call.1} parent=19 // pred_region
          %s311 = sadd.s32 %s45, %s46
          %s312 = sld [smem:[#allocation3 + %s311]]
          %s313 = smul.u32 16, %s312
          %p314 = scmp.lt.s32.totalorder %s313, 15
          %s315 = scalar_select %p314, %s313, 15
          %s316 = smul.addr %s315, 4
          %s317 = scalar_lea.vmem %s4, %s316
          %s318 = sadd.s32 %s45, %s46
          %s319 = sld [smem:[#allocation3 + %s318]]
          %s320 = smul.u32 16, %s319
        $region24: #{tpu_custom_call.1} parent=19 // pred_fallthru
          _
        // Predicated region
        $region25: #{tpu_custom_call.1} parent=19 // pred_check
          %p321 = pneg %p125
        $region26: #{tpu_custom_call.1} parent=19 // pred_check_branch
          %323 = sbr.rel (%p321) target = $region28
        $region27: #{tpu_custom_call.1} parent=19 // pred_region
          %s324 = sadd.s32 %s45, %s46
          %s325 = sld [smem:[#allocation4 + %s324]]
          %s326 = smul.u32 16, %s325
          %p327 = scmp.lt.s32.totalorder %s326, 15
          %s328 = scalar_select %p327, %s326, 15
          %s329 = smul.addr %s328, 4
          %s330 = scalar_lea.vmem %s5, %s329
          %s331 = sadd.s32 %s45, %s46
          %s332 = sld [smem:[#allocation4 + %s331]]
          %s333 = smul.u32 16, %s332
        $region28: #{tpu_custom_call.1} parent=19 // pred_fallthru
          _
        // Predicated region
        $region29: #{tpu_custom_call.1} parent=19 // pred_check
          %p334 = pneg %p155
        $region30: #{tpu_custom_call.1} parent=19 // pred_check_branch
          %336 = sbr.rel (%p334) target = $region32
        $region31: #{tpu_custom_call.1} parent=19 // pred_region
          %s337 = sadd.s32 %s45, %s46
          %s338 = sld [smem:[#allocation3 + %s337]]
          %s339 = smul.u32 16, %s338
          %p340 = scmp.lt.s32.totalorder %s339, 15
          %s341 = scalar_select %p340, %s339, 15
          %s342 = smul.addr %s341, 8
          %s343 = scalar_lea.vmem %s6, %s342
          %s344 = sadd.s32 %s45, %s46
          %s345 = sld [smem:[#allocation3 + %s344]]
          %s346 = smul.u32 16, %s345
        $region32: #{tpu_custom_call.1} parent=19 // pred_fallthru
          _
        // Predicated region
        $region33: #{tpu_custom_call.1} parent=19 // pred_check
          %p347 = pneg %p185
        $region34: #{tpu_custom_call.1} parent=19 // pred_check_branch
          %349 = sbr.rel (%p347) target = $region36
        $region35: #{tpu_custom_call.1} parent=19 // pred_region
          %s350 = sadd.s32 %s45, %s46
          %s351 = sld [smem:[#allocation4 + %s350]]
          %p352 = scmp.lt.s32.totalorder %s351, 0
          %s353 = scalar_select %p352, %s351, 0
          %s354 = scalar_lea.vmem %s7, %s353
          %s355 = sadd.s32 %s45, %s46
          %s356 = sld [smem:[#allocation4 + %s355]]
        $region36: #{tpu_custom_call.1} parent=19 // pred_fallthru
          _
        // Predicated region
        $region37: #{tpu_custom_call.1} parent=19 // pred_check
          %p357 = pneg %p215
        $region38: #{tpu_custom_call.1} parent=19 // pred_check_branch
          %359 = sbr.rel (%p357) target = $region40
        $region39: #{tpu_custom_call.1} parent=19 // pred_region
          %s360 = sadd.s32 %s45, %s46
          %s361 = sld [smem:[#allocation3 + %s360]]
          %s362 = smul.u32 16, %s361
          %p363 = scmp.lt.s32.totalorder %s362, 15
          %s364 = scalar_select %p363, %s362, 15
          %s365 = smul.addr %s364, 8
          %s366 = scalar_lea.vmem %s8, %s365
          %s367 = sadd.s32 %s45, %s46
          %s368 = sld [smem:[#allocation3 + %s367]]
          %s369 = smul.u32 16, %s368
        $region40: #{tpu_custom_call.1} parent=19 // pred_fallthru
          _
        // Predicated region
        $region41: #{tpu_custom_call.1} parent=19 // pred_check
          %p370 = pneg %p245
        $region42: #{tpu_custom_call.1} parent=19 // pred_check_branch
          %372 = sbr.rel (%p370) target = $region44
        $region43: #{tpu_custom_call.1} parent=19 // pred_region
          %s373 = sadd.s32 %s45, %s46
          %s374 = sld [smem:[#allocation4 + %s373]]
          %p375 = scmp.lt.s32.totalorder %s374, 0
          %s376 = scalar_select %p375, %s374, 0
          %s377 = scalar_lea.vmem %s9, %s376
          %s378 = sadd.s32 %s45, %s46
          %s379 = sld [smem:[#allocation4 + %s378]]
        $region44: #{tpu_custom_call.1} parent=19 // pred_fallthru
          _
      $region20: #{tpu_custom_call.1} parent=5 // pred_fallthru
        _
      %p380 = scmp.le.s32.totalorder 1, %s38
      %p381 = scmp.lt.s32.totalorder %s38, 3
      %p382 = pnand %p380, %p381
      %p383 = pneg %p382
      // Predicated region
      $region45: #{tpu_custom_call.1} parent=5 // pred_check
        _
      $region46: #{tpu_custom_call.1} parent=5 // pred_check_branch
        %385 = sbr.rel (%p382) target = $region48
      $region47: #{tpu_custom_call.1} parent=5 // pred_region
        %s386 = ssub.s32 %s38, 1
        // Predicated region
        $region49: #{tpu_custom_call.1} parent=47 // pred_check
          %p387 = pneg %p71
        $region50: #{tpu_custom_call.1} parent=47 // pred_check_branch
          %389 = sbr.rel (%p387) target = $region52
        $region51: #{tpu_custom_call.1} parent=47 // pred_region
          %391 = dma.done [#allocation8], 16
        $region52: #{tpu_custom_call.1} parent=47 // pred_fallthru
          _
        %392 = sfence
        %p393 = pneg %p71
        %p394 = pneg %p68
        %s395 = sadd.s32 %s47, %s48
        %s396 = sld [smem:[#allocation3 + %s395]]
        %s397 = smul.u32 16, %s396
        %p398 = scmp.lt.s32.totalorder %s397, 15
        %s399 = scalar_select %p398, %s397, 15
        %s400 = smul.addr %s399, 4
        %s401 = scalar_lea.vmem %s4, %s400
        %p402 = pneg %p101
        %p403 = pneg %p98
        %s404 = sadd.s32 %s47, %s48
        %s405 = sld [smem:[#allocation4 + %s404]]
        %s406 = smul.u32 16, %s405
        %p407 = scmp.lt.s32.totalorder %s406, 15
        %s408 = scalar_select %p407, %s406, 15
        %s409 = smul.addr %s408, 4
        %s410 = scalar_lea.vmem %s5, %s409
        %p411 = pneg %p131
        %p412 = pneg %p128
        %s413 = sadd.s32 %s47, %s48
        %s414 = sld [smem:[#allocation3 + %s413]]
        %s415 = smul.u32 16, %s414
        %p416 = scmp.lt.s32.totalorder %s415, 15
        %s417 = scalar_select %p416, %s415, 15
        %s418 = smul.addr %s417, 8
        %s419 = scalar_lea.vmem %s6, %s418
        %p420 = pneg %p161
        %p421 = pneg %p158
        %s422 = sadd.s32 %s47, %s48
        %s423 = sld [smem:[#allocation4 + %s422]]
        %p424 = scmp.lt.s32.totalorder %s423, 0
        %s425 = scalar_select %p424, %s423, 0
        %s426 = scalar_lea.vmem %s7, %s425
        %p427 = pneg %p191
        %p428 = pneg %p188
        %s429 = sadd.s32 %s47, %s48
        %s430 = sld [smem:[#allocation3 + %s429]]
        %s431 = smul.u32 16, %s430
        %p432 = scmp.lt.s32.totalorder %s431, 15
        %s433 = scalar_select %p432, %s431, 15
        %s434 = smul.addr %s433, 8
        %s435 = scalar_lea.vmem %s8, %s434
        %p436 = pneg %p221
        %p437 = pneg %p218
        %s438 = sadd.s32 %s47, %s48
        %s439 = sld [smem:[#allocation4 + %s438]]
        %p440 = scmp.lt.s32.totalorder %s439, 0
        %s441 = scalar_select %p440, %s439, 0
        %s442 = scalar_lea.vmem %s9, %s441
        %p443 = pneg %p251
        %p444 = pneg %p248
        %p445 = pneg %p279
        %p446 = pneg %p276
        %s447 = sand.u32 %s266, 1
        %s448 = scalar_lea.sflag [#allocation7], %s447
        %s449 = sand.u32 %s266, 1
        %s450 = smul.addr %s449, 8
        %s451 = scalar_lea.vmem [#allocation9], %s450
        %s452 = sadd.s32 %s47, %s48
        %s453 = sld [smem:[#allocation3 + %s452]]
        %s454 = smul.u32 16, %s453
        %p455 = scmp.lt.s32.totalorder %s454, 15
        %s456 = scalar_select %p455, %s454, 15
        %s457 = smul.addr %s456, 4
        %s458 = scalar_lea.vmem %s4, %s457
        %s459 = sadd.s32 %s47, %s48
        %s460 = sld [smem:[#allocation3 + %s459]]
        %s461 = smul.u32 16, %s460
        %s462 = sadd.s32 %s47, %s48
        %s463 = sld [smem:[#allocation4 + %s462]]
        %s464 = smul.u32 16, %s463
        %p465 = scmp.lt.s32.totalorder %s464, 15
        %s466 = scalar_select %p465, %s464, 15
        %s467 = smul.addr %s466, 4
        %s468 = scalar_lea.vmem %s5, %s467
        %s469 = sadd.s32 %s47, %s48
        %s470 = sld [smem:[#allocation4 + %s469]]
        %s471 = smul.u32 16, %s470
        %s472 = sadd.s32 %s47, %s48
        %s473 = sld [smem:[#allocation3 + %s472]]
        %s474 = smul.u32 16, %s473
        %p475 = scmp.lt.s32.totalorder %s474, 15
        %s476 = scalar_select %p475, %s474, 15
        %s477 = smul.addr %s476, 8
        %s478 = scalar_lea.vmem %s6, %s477
        %s479 = sadd.s32 %s47, %s48
        %s480 = sld [smem:[#allocation3 + %s479]]
        %s481 = smul.u32 16, %s480
        %s482 = sadd.s32 %s47, %s48
        %s483 = sld [smem:[#allocation4 + %s482]]
        %p484 = scmp.lt.s32.totalorder %s483, 0
        %s485 = scalar_select %p484, %s483, 0
        %s486 = scalar_lea.vmem %s7, %s485
        %s487 = sadd.s32 %s47, %s48
        %s488 = sld [smem:[#allocation4 + %s487]]
        %s489 = sadd.s32 %s47, %s48
        %s490 = sld [smem:[#allocation3 + %s489]]
        %s491 = smul.u32 16, %s490
        %p492 = scmp.lt.s32.totalorder %s491, 15
        %s493 = scalar_select %p492, %s491, 15
        %s494 = smul.addr %s493, 8
        %s495 = scalar_lea.vmem %s8, %s494
        %s496 = sadd.s32 %s47, %s48
        %s497 = sld [smem:[#allocation3 + %s496]]
        %s498 = smul.u32 16, %s497
        %s499 = sadd.s32 %s47, %s48
        %s500 = sld [smem:[#allocation4 + %s499]]
        %p501 = scmp.lt.s32.totalorder %s500, 0
        %s502 = scalar_select %p501, %s500, 0
        %s503 = scalar_lea.vmem %s9, %s502
        %s504 = sadd.s32 %s47, %s48
        %s505 = sld [smem:[#allocation4 + %s504]]
        %s506 = sadd.s32 %s47, %s48
        %s507 = sadd.s32 %s47, %s48
        %s508 = sld [smem:[#allocation5 + %s507]]
        %s509 = scvt.s32.f32 %s508
        %v510 = vld [vmem:[%s458] sm:$0xf]
        %v511 = vld [vmem:[%s458 + $0x4] sm:$0xf]
        %v512 = vld [vmem:[%s458 + $0x8] sm:$0xf]
        %v513 = vld [vmem:[%s458 + $0xc] sm:$0xf]
        %v514 = vld [vmem:[%s458 + $0x10] sm:$0xf]
        %v515 = vld [vmem:[%s458 + $0x14] sm:$0xf]
        %v516 = vld [vmem:[%s458 + $0x18] sm:$0xf]
        %v517 = vld [vmem:[%s458 + $0x1c] sm:$0xf]
        %v518 = vld [vmem:[%s458 + $0x20] sm:$0xf]
        %v519 = vld [vmem:[%s458 + $0x24] sm:$0xf]
        %v520 = vld [vmem:[%s458 + $0x28] sm:$0xf]
        %v521 = vld [vmem:[%s458 + $0x2c] sm:$0xf]
        %v522 = vld [vmem:[%s458 + $0x30] sm:$0xf]
        %v523 = vld [vmem:[%s458 + $0x34] sm:$0xf]
        %v524 = vld [vmem:[%s458 + $0x38] sm:$0xf]
        %v525 = vld [vmem:[%s458 + $0x3c] sm:$0xf]
        %v526 = vld [vmem:[%s468] sm:$0xf]
        %v527 = vld [vmem:[%s468 + $0x4] sm:$0xf]
        %v528 = vld [vmem:[%s468 + $0x8] sm:$0xf]
        %v529 = vld [vmem:[%s468 + $0xc] sm:$0xf]
        %v530 = vld [vmem:[%s468 + $0x10] sm:$0xf]
        %v531 = vld [vmem:[%s468 + $0x14] sm:$0xf]
        %v532 = vld [vmem:[%s468 + $0x18] sm:$0xf]
        %v533 = vld [vmem:[%s468 + $0x1c] sm:$0xf]
        %v534 = vld [vmem:[%s468 + $0x20] sm:$0xf]
        %v535 = vld [vmem:[%s468 + $0x24] sm:$0xf]
        %v536 = vld [vmem:[%s468 + $0x28] sm:$0xf]
        %v537 = vld [vmem:[%s468 + $0x2c] sm:$0xf]
        %v538 = vld [vmem:[%s468 + $0x30] sm:$0xf]
        %v539 = vld [vmem:[%s468 + $0x34] sm:$0xf]
        %v540 = vld [vmem:[%s468 + $0x38] sm:$0xf]
        %v541 = vld [vmem:[%s468 + $0x3c] sm:$0xf]
        %v558 = vunpack.c.l.b16 %v510
        %v559 = vunpack.c.l.b16 %v511
        %v560 = vunpack.c.l.b16 %v512
        %v561 = vunpack.c.l.b16 %v513
        %v562 = vunpack.c.l.b16 %v514
        %v563 = vunpack.c.l.b16 %v515
        %v564 = vunpack.c.l.b16 %v516
        %v565 = vunpack.c.l.b16 %v517
        %v566 = vunpack.c.l.b16 %v518
        %v567 = vunpack.c.l.b16 %v519
        %v568 = vunpack.c.l.b16 %v520
        %v569 = vunpack.c.l.b16 %v521
        %v570 = vunpack.c.l.b16 %v522
        %v571 = vunpack.c.l.b16 %v523
        %v572 = vunpack.c.l.b16 %v524
        %v573 = vunpack.c.l.b16 %v525
        %v574 = vpack.c.b16 %v559, %v558
        %v575 = vpack.c.b16 %v561, %v560
        %v576 = vpack.c.b16 %v563, %v562
        %v577 = vpack.c.b16 %v565, %v564
        %v578 = vpack.c.b16 %v567, %v566
        %v579 = vpack.c.b16 %v569, %v568
        %v580 = vpack.c.b16 %v571, %v570
        %v581 = vpack.c.b16 %v573, %v572
        %v598 = vunpack.c.l.b16 %v526
        %v599 = vunpack.c.l.b16 %v527
        %v600 = vunpack.c.l.b16 %v528
        %v601 = vunpack.c.l.b16 %v529
        %v602 = vunpack.c.l.b16 %v530
        %v603 = vunpack.c.l.b16 %v531
        %v604 = vunpack.c.l.b16 %v532
        %v605 = vunpack.c.l.b16 %v533
        %v606 = vunpack.c.l.b16 %v534
        %v607 = vunpack.c.l.b16 %v535
        %v608 = vunpack.c.l.b16 %v536
        %v609 = vunpack.c.l.b16 %v537
        %v610 = vunpack.c.l.b16 %v538
        %v611 = vunpack.c.l.b16 %v539
        %v612 = vunpack.c.l.b16 %v540
        %v613 = vunpack.c.l.b16 %v541
        %v614 = vpack.c.b16 %v599, %v598
        %v615 = vpack.c.b16 %v601, %v600
        %v616 = vpack.c.b16 %v603, %v602
        %v617 = vpack.c.b16 %v605, %v604
        %v618 = vpack.c.b16 %v607, %v606
        %v619 = vpack.c.b16 %v609, %v608
        %v620 = vpack.c.b16 %v611, %v610
        %v621 = vpack.c.b16 %v613, %v612
        %vm622 = vcmask 261120
        %v624 = vsel %vm622, %v574, 0
        %v627 = vsel %vm622, %v575, 0
        %v630 = vsel %vm622, %v576, 0
        %v633 = vsel %vm622, %v577, 0
        %v636 = vsel %vm622, %v578, 0
        %v639 = vsel %vm622, %v579, 0
        %v642 = vsel %vm622, %v580, 0
        %v645 = vsel %vm622, %v581, 0
        %v648 = vsel %vm622, %v614, 0
        %v651 = vsel %vm622, %v615, 0
        %v654 = vsel %vm622, %v616, 0
        %v657 = vsel %vm622, %v617, 0
        %v660 = vsel %vm622, %v618, 0
        %v663 = vsel %vm622, %v619, 0
        %v666 = vsel %vm622, %v620, 0
        %v669 = vsel %vm622, %v621, 0
        %671 = vmatpush.bf16.xpose.msra.mxu0 %v669
        %672 = vmatpush.bf16.xpose.msra.mxu0 %v666
        %673 = vmatpush.bf16.xpose.msra.mxu0 %v663
        %674 = vmatpush.bf16.xpose.msra.mxu0 %v660
        %675 = vmatpush.bf16.xpose.msra.mxu0 %v657
        %676 = vmatpush.bf16.xpose.msra.mxu0 %v654
        %677 = vmatpush.bf16.xpose.msra.mxu0 %v651
        %678 = vmatpush.bf16.xpose.msra.mxu0 %v648
        %679 = vmatmul.bf16.gmra.mxu0 %v624
        %v680 = vpop.f32.mrf.mxu0
        %v681 = vadd.f32 0.0, %v680
        %v682 = vpop.f32.mrf.mxu0
        %v683 = vadd.f32 0.0, %v682
        %684 = vmatmul.bf16.gmra.mxu0 %v627
        %v685 = vpop.f32.mrf.mxu0
        %v686 = vadd.f32 0.0, %v685
        %v687 = vpop.f32.mrf.mxu0
        %v688 = vadd.f32 0.0, %v687
        %689 = vmatmul.bf16.gmra.mxu0 %v630
        %v690 = vpop.f32.mrf.mxu0
        %v691 = vadd.f32 0.0, %v690
        %v692 = vpop.f32.mrf.mxu0
        %v693 = vadd.f32 0.0, %v692
        %694 = vmatmul.bf16.gmra.mxu0 %v633
        %v695 = vpop.f32.mrf.mxu0
        %v696 = vadd.f32 0.0, %v695
        %v697 = vpop.f32.mrf.mxu0
        %v698 = vadd.f32 0.0, %v697
        %699 = vmatmul.bf16.gmra.mxu0 %v636
        %v700 = vpop.f32.mrf.mxu0
        %v701 = vadd.f32 0.0, %v700
        %v702 = vpop.f32.mrf.mxu0
        %v703 = vadd.f32 0.0, %v702
        %704 = vmatmul.bf16.gmra.mxu0 %v639
        %v705 = vpop.f32.mrf.mxu0
        %v706 = vadd.f32 0.0, %v705
        %v707 = vpop.f32.mrf.mxu0
        %v708 = vadd.f32 0.0, %v707
        %709 = vmatmul.bf16.gmra.mxu0 %v642
        %v710 = vpop.f32.mrf.mxu0
        %v711 = vadd.f32 0.0, %v710
        %v712 = vpop.f32.mrf.mxu0
        %v713 = vadd.f32 0.0, %v712
        %714 = vmatmul.bf16.gmra.mxu0 %v645
        %v715 = vpop.f32.mrf.mxu0
        %v716 = vadd.f32 0.0, %v715
        %v717 = vpop.f32.mrf.mxu0
        %v718 = vadd.f32 0.0, %v717
        %719 = vdwg.mxu0
        %v720 = vld [vmem:[%s495] sm:$0xff]
        %v721 = vld [vmem:[%s495 + $0x8] sm:$0xff]
        %v722 = vld [vmem:[%s495 + $0x10] sm:$0xff]
        %v723 = vld [vmem:[%s495 + $0x18] sm:$0xff]
        %v724 = vld [vmem:[%s495 + $0x20] sm:$0xff]
        %v725 = vld [vmem:[%s495 + $0x28] sm:$0xff]
        %v726 = vld [vmem:[%s495 + $0x30] sm:$0xff]
        %v727 = vld [vmem:[%s495 + $0x38] sm:$0xff]
        %v728 = vld [vmem:[%s495 + $0x40] sm:$0xff]
        %v729 = vld [vmem:[%s495 + $0x48] sm:$0xff]
        %v730 = vld [vmem:[%s495 + $0x50] sm:$0xff]
        %v731 = vld [vmem:[%s495 + $0x58] sm:$0xff]
        %v732 = vld [vmem:[%s495 + $0x60] sm:$0xff]
        %v733 = vld [vmem:[%s495 + $0x68] sm:$0xff]
        %v734 = vld [vmem:[%s495 + $0x70] sm:$0xff]
        %v735 = vld [vmem:[%s495 + $0x78] sm:$0xff]
        %v736 = vld [vmem:[%s503] sm:$0x1]
        %738 = vset.pattern.permute.xlu0 0
        %739 = vperm.xlu0 %738, %v720
        %v740 = vpop.permute.xlu0 %739
        %743 = vset.pattern.permute.xlu0 0
        %744 = vperm.xlu0 %743, %v721
        %v745 = vpop.permute.xlu0 %744
        %748 = vset.pattern.permute.xlu0 0
        %749 = vperm.xlu0 %748, %v722
        %v750 = vpop.permute.xlu0 %749
        %753 = vset.pattern.permute.xlu0 0
        %754 = vperm.xlu0 %753, %v723
        %v755 = vpop.permute.xlu0 %754
        %758 = vset.pattern.permute.xlu0 0
        %759 = vperm.xlu0 %758, %v724
        %v760 = vpop.permute.xlu0 %759
        %763 = vset.pattern.permute.xlu0 0
        %764 = vperm.xlu0 %763, %v725
        %v765 = vpop.permute.xlu0 %764
        %768 = vset.pattern.permute.xlu0 0
        %769 = vperm.xlu0 %768, %v726
        %v770 = vpop.permute.xlu0 %769
        %773 = vset.pattern.permute.xlu0 0
        %774 = vperm.xlu0 %773, %v727
        %v775 = vpop.permute.xlu0 %774
        %778 = vset.pattern.permute.xlu0 0
        %779 = vperm.xlu0 %778, %v728
        %v780 = vpop.permute.xlu0 %779
        %783 = vset.pattern.permute.xlu0 0
        %784 = vperm.xlu0 %783, %v729
        %v785 = vpop.permute.xlu0 %784
        %788 = vset.pattern.permute.xlu0 0
        %789 = vperm.xlu0 %788, %v730
        %v790 = vpop.permute.xlu0 %789
        %793 = vset.pattern.permute.xlu0 0
        %794 = vperm.xlu0 %793, %v731
        %v795 = vpop.permute.xlu0 %794
        %798 = vset.pattern.permute.xlu0 0
        %799 = vperm.xlu0 %798, %v732
        %v800 = vpop.permute.xlu0 %799
        %803 = vset.pattern.permute.xlu0 0
        %804 = vperm.xlu0 %803, %v733
        %v805 = vpop.permute.xlu0 %804
        %808 = vset.pattern.permute.xlu0 0
        %809 = vperm.xlu0 %808, %v734
        %v810 = vpop.permute.xlu0 %809
        %813 = vset.pattern.permute.xlu0 0
        %814 = vperm.xlu0 %813, %v735
        %v815 = vpop.permute.xlu0 %814
        %v818 = vperm.slane %v736, 0
        %v820 = vadd.f32 %v740, %v818
        %v821 = vadd.f32 %v745, %v818
        %v822 = vadd.f32 %v750, %v818
        %v823 = vadd.f32 %v755, %v818
        %v824 = vadd.f32 %v760, %v818
        %v825 = vadd.f32 %v765, %v818
        %v826 = vadd.f32 %v770, %v818
        %v827 = vadd.f32 %v775, %v818
        %v828 = vadd.f32 %v780, %v818
        %v829 = vadd.f32 %v785, %v818
        %v830 = vadd.f32 %v790, %v818
        %v831 = vadd.f32 %v795, %v818
        %v832 = vadd.f32 %v800, %v818
        %v833 = vadd.f32 %v805, %v818
        %v834 = vadd.f32 %v810, %v818
        %v835 = vadd.f32 %v815, %v818
        %v836 = vmul.f32 %v681, 2.0
        %v837 = vmul.f32 %v683, 2.0
        %v838 = vmul.f32 %v686, 2.0
        %v839 = vmul.f32 %v688, 2.0
        %v840 = vmul.f32 %v691, 2.0
        %v841 = vmul.f32 %v693, 2.0
        %v842 = vmul.f32 %v696, 2.0
        %v843 = vmul.f32 %v698, 2.0
        %v844 = vmul.f32 %v701, 2.0
        %v845 = vmul.f32 %v703, 2.0
        %v846 = vmul.f32 %v706, 2.0
        %v847 = vmul.f32 %v708, 2.0
        %v848 = vmul.f32 %v711, 2.0
        %v849 = vmul.f32 %v713, 2.0
        %v850 = vmul.f32 %v716, 2.0
        %v851 = vmul.f32 %v718, 2.0
        %v852 = vsub.f32 %v820, %v836
        %v853 = vsub.f32 %v821, %v837
        %v854 = vsub.f32 %v822, %v838
        %v855 = vsub.f32 %v823, %v839
        %v856 = vsub.f32 %v824, %v840
        %v857 = vsub.f32 %v825, %v841
        %v858 = vsub.f32 %v826, %v842
        %v859 = vsub.f32 %v827, %v843
        %v860 = vsub.f32 %v828, %v844
        %v861 = vsub.f32 %v829, %v845
        %v862 = vsub.f32 %v830, %v846
        %v863 = vsub.f32 %v831, %v847
        %v864 = vsub.f32 %v832, %v848
        %v865 = vsub.f32 %v833, %v849
        %v866 = vsub.f32 %v834, %v850
        %v867 = vsub.f32 %v835, %v851
        %v868 = vmax.f32 %v852, 0.0
        %v869 = vmax.f32 %v853, 0.0
        %v870 = vmax.f32 %v854, 0.0
        %v871 = vmax.f32 %v855, 0.0
        %v872 = vmax.f32 %v856, 0.0
        %v873 = vmax.f32 %v857, 0.0
        %v874 = vmax.f32 %v858, 0.0
        %v875 = vmax.f32 %v859, 0.0
        %v876 = vmax.f32 %v860, 0.0
        %v877 = vmax.f32 %v861, 0.0
        %v878 = vmax.f32 %v862, 0.0
        %v879 = vmax.f32 %v863, 0.0
        %v880 = vmax.f32 %v864, 0.0
        %v881 = vmax.f32 %v865, 0.0
        %v882 = vmax.f32 %v866, 0.0
        %v883 = vmax.f32 %v867, 0.0
        %s884 = sld [smem:[#allocation6 + $0x4]]
        %v885 = vstv %s884
        %v886 = vmul.f32 %v868, %v885
        %v887 = vmul.f32 %v869, %v885
        %v888 = vmul.f32 %v870, %v885
        %v889 = vmul.f32 %v871, %v885
        %v890 = vmul.f32 %v872, %v885
        %v891 = vmul.f32 %v873, %v885
        %v892 = vmul.f32 %v874, %v885
        %v893 = vmul.f32 %v875, %v885
        %v894 = vmul.f32 %v876, %v885
        %v895 = vmul.f32 %v877, %v885
        %v896 = vmul.f32 %v878, %v885
        %v897 = vmul.f32 %v879, %v885
        %v898 = vmul.f32 %v880, %v885
        %v899 = vmul.f32 %v881, %v885
        %v900 = vmul.f32 %v882, %v885
        %v901 = vmul.f32 %v883, %v885
        %v902 = vmul.f32 %v886, 1.442695
        %v903 = vpow.pop %v902
        %v904 = vmul.f32 %v887, 1.442695
        %v905 = vpow.pop %v904
        %v906 = vmul.f32 %v888, 1.442695
        %v907 = vpow.pop %v906
        %v908 = vmul.f32 %v889, 1.442695
        %v909 = vpow.pop %v908
        %v910 = vmul.f32 %v890, 1.442695
        %v911 = vpow.pop %v910
        %v912 = vmul.f32 %v891, 1.442695
        %v913 = vpow.pop %v912
        %v914 = vmul.f32 %v892, 1.442695
        %v915 = vpow.pop %v914
        %v916 = vmul.f32 %v893, 1.442695
        %v917 = vpow.pop %v916
        %v918 = vmul.f32 %v894, 1.442695
        %v919 = vpow.pop %v918
        %v920 = vmul.f32 %v895, 1.442695
        %v921 = vpow.pop %v920
        %v922 = vmul.f32 %v896, 1.442695
        %v923 = vpow.pop %v922
        %v924 = vmul.f32 %v897, 1.442695
        %v925 = vpow.pop %v924
        %v926 = vmul.f32 %v898, 1.442695
        %v927 = vpow.pop %v926
        %v928 = vmul.f32 %v899, 1.442695
        %v929 = vpow.pop %v928
        %v930 = vmul.f32 %v900, 1.442695
        %v931 = vpow.pop %v930
        %v932 = vmul.f32 %v901, 1.442695
        %v933 = vpow.pop %v932
        %v934 = vmul.f32 %v903, %v903
        %v935 = vmul.f32 %v905, %v905
        %v936 = vmul.f32 %v907, %v907
        %v937 = vmul.f32 %v909, %v909
        %v938 = vmul.f32 %v911, %v911
        %v939 = vmul.f32 %v913, %v913
        %v940 = vmul.f32 %v915, %v915
        %v941 = vmul.f32 %v917, %v917
        %v942 = vmul.f32 %v919, %v919
        %v943 = vmul.f32 %v921, %v921
        %v944 = vmul.f32 %v923, %v923
        %v945 = vmul.f32 %v925, %v925
        %v946 = vmul.f32 %v927, %v927
        %v947 = vmul.f32 %v929, %v929
        %v948 = vmul.f32 %v931, %v931
        %v949 = vmul.f32 %v933, %v933
        %v950 = vadd.f32 %v903, %v934
        %v951 = vadd.f32 %v905, %v935
        %v952 = vadd.f32 %v907, %v936
        %v953 = vadd.f32 %v909, %v937
        %v954 = vadd.f32 %v911, %v938
        %v955 = vadd.f32 %v913, %v939
        %v956 = vadd.f32 %v915, %v940
        %v957 = vadd.f32 %v917, %v941
        %v958 = vadd.f32 %v919, %v942
        %v959 = vadd.f32 %v921, %v943
        %v960 = vadd.f32 %v923, %v944
        %v961 = vadd.f32 %v925, %v945
        %v962 = vadd.f32 %v927, %v946
        %v963 = vadd.f32 %v929, %v947
        %v964 = vadd.f32 %v931, %v948
        %v965 = vadd.f32 %v933, %v949
        %v966 = vmul.f32 %v934, %v934
        %v967 = vmul.f32 %v935, %v935
        %v968 = vmul.f32 %v936, %v936
        %v969 = vmul.f32 %v937, %v937
        %v970 = vmul.f32 %v938, %v938
        %v971 = vmul.f32 %v939, %v939
        %v972 = vmul.f32 %v940, %v940
        %v973 = vmul.f32 %v941, %v941
        %v974 = vmul.f32 %v942, %v942
        %v975 = vmul.f32 %v943, %v943
        %v976 = vmul.f32 %v944, %v944
        %v977 = vmul.f32 %v945, %v945
        %v978 = vmul.f32 %v946, %v946
        %v979 = vmul.f32 %v947, %v947
        %v980 = vmul.f32 %v948, %v948
        %v981 = vmul.f32 %v949, %v949
        %v982 = vadd.f32 %v950, %v966
        %v983 = vadd.f32 %v951, %v967
        %v984 = vadd.f32 %v952, %v968
        %v985 = vadd.f32 %v953, %v969
        %v986 = vadd.f32 %v954, %v970
        %v987 = vadd.f32 %v955, %v971
        %v988 = vadd.f32 %v956, %v972
        %v989 = vadd.f32 %v957, %v973
        %v990 = vadd.f32 %v958, %v974
        %v991 = vadd.f32 %v959, %v975
        %v992 = vadd.f32 %v960, %v976
        %v993 = vadd.f32 %v961, %v977
        %v994 = vadd.f32 %v962, %v978
        %v995 = vadd.f32 %v963, %v979
        %v996 = vadd.f32 %v964, %v980
        %v997 = vadd.f32 %v965, %v981
        %v998 = vmul.f32 %v966, %v966
        %v999 = vmul.f32 %v967, %v967
        %v1000 = vmul.f32 %v968, %v968
        %v1001 = vmul.f32 %v969, %v969
        %v1002 = vmul.f32 %v970, %v970
        %v1003 = vmul.f32 %v971, %v971
        %v1004 = vmul.f32 %v972, %v972
        %v1005 = vmul.f32 %v973, %v973
        %v1006 = vmul.f32 %v974, %v974
        %v1007 = vmul.f32 %v975, %v975
        %v1008 = vmul.f32 %v976, %v976
        %v1009 = vmul.f32 %v977, %v977
        %v1010 = vmul.f32 %v978, %v978
        %v1011 = vmul.f32 %v979, %v979
        %v1012 = vmul.f32 %v980, %v980
        %v1013 = vmul.f32 %v981, %v981
        %v1014 = vadd.f32 %v982, %v998
        %v1015 = vadd.f32 %v983, %v999
        %v1016 = vadd.f32 %v984, %v1000
        %v1017 = vadd.f32 %v985, %v1001
        %v1018 = vadd.f32 %v986, %v1002
        %v1019 = vadd.f32 %v987, %v1003
        %v1020 = vadd.f32 %v988, %v1004
        %v1021 = vadd.f32 %v989, %v1005
        %v1022 = vadd.f32 %v990, %v1006
        %v1023 = vadd.f32 %v991, %v1007
        %v1024 = vadd.f32 %v992, %v1008
        %v1025 = vadd.f32 %v993, %v1009
        %v1026 = vadd.f32 %v994, %v1010
        %v1027 = vadd.f32 %v995, %v1011
        %v1028 = vadd.f32 %v996, %v1012
        %v1029 = vadd.f32 %v997, %v1013
        %v1030 = vmul.f32 %v998, %v998
        %v1031 = vmul.f32 %v999, %v999
        %v1032 = vmul.f32 %v1000, %v1000
        %v1033 = vmul.f32 %v1001, %v1001
        %v1034 = vmul.f32 %v1002, %v1002
        %v1035 = vmul.f32 %v1003, %v1003
        %v1036 = vmul.f32 %v1004, %v1004
        %v1037 = vmul.f32 %v1005, %v1005
        %v1038 = vmul.f32 %v1006, %v1006
        %v1039 = vmul.f32 %v1007, %v1007
        %v1040 = vmul.f32 %v1008, %v1008
        %v1041 = vmul.f32 %v1009, %v1009
        %v1042 = vmul.f32 %v1010, %v1010
        %v1043 = vmul.f32 %v1011, %v1011
        %v1044 = vmul.f32 %v1012, %v1012
        %v1045 = vmul.f32 %v1013, %v1013
        %v1046 = vadd.f32 %v1014, %v1030
        %v1047 = vadd.f32 %v1015, %v1031
        %v1048 = vadd.f32 %v1016, %v1032
        %v1049 = vadd.f32 %v1017, %v1033
        %v1050 = vadd.f32 %v1018, %v1034
        %v1051 = vadd.f32 %v1019, %v1035
        %v1052 = vadd.f32 %v1020, %v1036
        %v1053 = vadd.f32 %v1021, %v1037
        %v1054 = vadd.f32 %v1022, %v1038
        %v1055 = vadd.f32 %v1023, %v1039
        %v1056 = vadd.f32 %v1024, %v1040
        %v1057 = vadd.f32 %v1025, %v1041
        %v1058 = vadd.f32 %v1026, %v1042
        %v1059 = vadd.f32 %v1027, %v1043
        %v1060 = vadd.f32 %v1028, %v1044
        %v1061 = vadd.f32 %v1029, %v1045
        %v1062 = vld [vmem:[%s486] sm:$0x1]
        %v1064 = vperm.slane %v1062, 0
        %v1066 = vmul.f32 %v1046, %v1064
        %v1067 = vmul.f32 %v1047, %v1064
        %v1068 = vmul.f32 %v1048, %v1064
        %v1069 = vmul.f32 %v1049, %v1064
        %v1070 = vmul.f32 %v1050, %v1064
        %v1071 = vmul.f32 %v1051, %v1064
        %v1072 = vmul.f32 %v1052, %v1064
        %v1073 = vmul.f32 %v1053, %v1064
        %v1074 = vmul.f32 %v1054, %v1064
        %v1075 = vmul.f32 %v1055, %v1064
        %v1076 = vmul.f32 %v1056, %v1064
        %v1077 = vmul.f32 %v1057, %v1064
        %v1078 = vmul.f32 %v1058, %v1064
        %v1079 = vmul.f32 %v1059, %v1064
        %v1080 = vmul.f32 %v1060, %v1064
        %v1081 = vmul.f32 %v1061, %v1064
        %v1082 = vld [vmem:[%s478] sm:$0xff]
        %v1083 = vld [vmem:[%s478 + $0x8] sm:$0xff]
        %v1084 = vld [vmem:[%s478 + $0x10] sm:$0xff]
        %v1085 = vld [vmem:[%s478 + $0x18] sm:$0xff]
        %v1086 = vld [vmem:[%s478 + $0x20] sm:$0xff]
        %v1087 = vld [vmem:[%s478 + $0x28] sm:$0xff]
        %v1088 = vld [vmem:[%s478 + $0x30] sm:$0xff]
        %v1089 = vld [vmem:[%s478 + $0x38] sm:$0xff]
        %v1090 = vld [vmem:[%s478 + $0x40] sm:$0xff]
        %v1091 = vld [vmem:[%s478 + $0x48] sm:$0xff]
        %v1092 = vld [vmem:[%s478 + $0x50] sm:$0xff]
        %v1093 = vld [vmem:[%s478 + $0x58] sm:$0xff]
        %v1094 = vld [vmem:[%s478 + $0x60] sm:$0xff]
        %v1095 = vld [vmem:[%s478 + $0x68] sm:$0xff]
        %v1096 = vld [vmem:[%s478 + $0x70] sm:$0xff]
        %v1097 = vld [vmem:[%s478 + $0x78] sm:$0xff]
        %v1098 = vstv %s509
        %v1099 = vmul.f32 %v1082, %v1098
        %v1100 = vmul.f32 %v1083, %v1098
        %v1101 = vmul.f32 %v1084, %v1098
        %v1102 = vmul.f32 %v1085, %v1098
        %v1103 = vmul.f32 %v1086, %v1098
        %v1104 = vmul.f32 %v1087, %v1098
        %v1105 = vmul.f32 %v1088, %v1098
        %v1106 = vmul.f32 %v1089, %v1098
        %v1107 = vmul.f32 %v1090, %v1098
        %v1108 = vmul.f32 %v1091, %v1098
        %v1109 = vmul.f32 %v1092, %v1098
        %v1110 = vmul.f32 %v1093, %v1098
        %v1111 = vmul.f32 %v1094, %v1098
        %v1112 = vmul.f32 %v1095, %v1098
        %v1113 = vmul.f32 %v1096, %v1098
        %v1114 = vmul.f32 %v1097, %v1098
        %1116 = vset.pattern.permute.xlu0 0
        %1117 = vperm.xlu0 %1116, %v1099
        %v1118 = vpop.permute.xlu0 %1117
        %1121 = vset.pattern.permute.xlu0 0
        %1122 = vperm.xlu0 %1121, %v1100
        %v1123 = vpop.permute.xlu0 %1122
        %1126 = vset.pattern.permute.xlu0 0
        %1127 = vperm.xlu0 %1126, %v1101
        %v1128 = vpop.permute.xlu0 %1127
        %1131 = vset.pattern.permute.xlu0 0
        %1132 = vperm.xlu0 %1131, %v1102
        %v1133 = vpop.permute.xlu0 %1132
        %1136 = vset.pattern.permute.xlu0 0
        %1137 = vperm.xlu0 %1136, %v1103
        %v1138 = vpop.permute.xlu0 %1137
        %1141 = vset.pattern.permute.xlu0 0
        %1142 = vperm.xlu0 %1141, %v1104
        %v1143 = vpop.permute.xlu0 %1142
        %1146 = vset.pattern.permute.xlu0 0
        %1147 = vperm.xlu0 %1146, %v1105
        %v1148 = vpop.permute.xlu0 %1147
        %1151 = vset.pattern.permute.xlu0 0
        %1152 = vperm.xlu0 %1151, %v1106
        %v1153 = vpop.permute.xlu0 %1152
        %1156 = vset.pattern.permute.xlu0 0
        %1157 = vperm.xlu0 %1156, %v1107
        %v1158 = vpop.permute.xlu0 %1157
        %1161 = vset.pattern.permute.xlu0 0
        %1162 = vperm.xlu0 %1161, %v1108
        %v1163 = vpop.permute.xlu0 %1162
        %1166 = vset.pattern.permute.xlu0 0
        %1167 = vperm.xlu0 %1166, %v1109
        %v1168 = vpop.permute.xlu0 %1167
        %1171 = vset.pattern.permute.xlu0 0
        %1172 = vperm.xlu0 %1171, %v1110
        %v1173 = vpop.permute.xlu0 %1172
        %1176 = vset.pattern.permute.xlu0 0
        %1177 = vperm.xlu0 %1176, %v1111
        %v1178 = vpop.permute.xlu0 %1177
        %1181 = vset.pattern.permute.xlu0 0
        %1182 = vperm.xlu0 %1181, %v1112
        %v1183 = vpop.permute.xlu0 %1182
        %1186 = vset.pattern.permute.xlu0 0
        %1187 = vperm.xlu0 %1186, %v1113
        %v1188 = vpop.permute.xlu0 %1187
        %1191 = vset.pattern.permute.xlu0 0
        %1192 = vperm.xlu0 %1191, %v1114
        %v1193 = vpop.permute.xlu0 %1192
        %v1195 = vmul.f32 %v1066, %v1118
        %v1196 = vmul.f32 %v1067, %v1123
        %v1197 = vmul.f32 %v1068, %v1128
        %v1198 = vmul.f32 %v1069, %v1133
        %v1199 = vmul.f32 %v1070, %v1138
        %v1200 = vmul.f32 %v1071, %v1143
        %v1201 = vmul.f32 %v1072, %v1148
        %v1202 = vmul.f32 %v1073, %v1153
        %v1203 = vmul.f32 %v1074, %v1158
        %v1204 = vmul.f32 %v1075, %v1163
        %v1205 = vmul.f32 %v1076, %v1168
        %v1206 = vmul.f32 %v1077, %v1173
        %v1207 = vmul.f32 %v1078, %v1178
        %v1208 = vmul.f32 %v1079, %v1183
        %v1209 = vmul.f32 %v1080, %v1188
        %v1210 = vmul.f32 %v1081, %v1193
        %v1211 = vadd.f32 %v1195, %v1196
        %v1212 = vadd.f32 %v1211, %v1197
        %v1213 = vadd.f32 %v1212, %v1198
        %v1214 = vadd.f32 %v1213, %v1199
        %v1215 = vadd.f32 %v1214, %v1200
        %v1216 = vadd.f32 %v1215, %v1201
        %v1217 = vadd.f32 %v1216, %v1202
        %v1218 = vadd.f32 %v1217, %v1203
        %v1219 = vadd.f32 %v1218, %v1204
        %v1220 = vadd.f32 %v1219, %v1205
        %v1221 = vadd.f32 %v1220, %v1206
        %v1222 = vadd.f32 %v1221, %v1207
        %v1223 = vadd.f32 %v1222, %v1208
        %v1224 = vadd.f32 %v1223, %v1209
        %v1225 = vadd.f32 %v1224, %v1210
        %1226 = vst [vmem:[%s451] sm:$0xff] %v1225
        %s1227 = sand.u32 %s266, 1
        %s1228 = scalar_lea.sflag [#allocation7], %s1227
        %s1229 = sand.u32 %s266, 1
        %s1230 = smul.addr %s1229, 8
        %s1231 = scalar_lea.vmem [#allocation9], %s1230
        // Predicated region
        $region53: #{tpu_custom_call.1} parent=47 // pred_check
          %p1232 = pneg %p276
        $region54: #{tpu_custom_call.1} parent=47 // pred_check_branch
          %1234 = sbr.rel (%p1232) target = $region56
        $region55: #{tpu_custom_call.1} parent=47 // pred_region
          %s1235 = sadd.s32 %s47, %s48
          %1237 = vsyncadd %s1228, 0
          %s1238 = smul.addr %s1235, 8
          %s1239 = scalar_lea.hbm %s10, %s1238
          %s1241 = sshll.u32 %s1231, 4
          %s1242 = int_to_ptr.vmem [resolvable:$true] %s1241
          %s1243 = sshll.u32 %s1239, 4
          %s1244 = int_to_ptr.hbm [resolvable:$true] %s1243
          %1246 = dma.vmem_to_hbm [thread:$0]  %s1242, 128, %s1244, %s1228
        $region56: #{tpu_custom_call.1} parent=47 // pred_fallthru
          _
      $region48: #{tpu_custom_call.1} parent=5 // pred_fallthru
        _
      %p1247 = scmp.le.s32.totalorder 2, %s38
      // Predicated region
      $region57: #{tpu_custom_call.1} parent=5 // pred_check
        %p1248 = pneg %p1247
      $region58: #{tpu_custom_call.1} parent=5 // pred_check_branch
        %1250 = sbr.rel (%p1248) target = $region60
      $region59: #{tpu_custom_call.1} parent=5 // pred_region
        %s1251 = ssub.s32 %s38, 2
        // Predicated region
        $region61: #{tpu_custom_call.1} parent=59 // pred_check
          %p1252 = pneg %p282
        $region62: #{tpu_custom_call.1} parent=59 // pred_check_branch
          %1254 = sbr.rel (%p1252) target = $region64
        $region63: #{tpu_custom_call.1} parent=59 // pred_region
          %s1255 = sand.u32 %s267, 1
          %s1256 = scalar_lea.sflag [#allocation7], %s1255
          %s1257 = sand.u32 %s267, 1
          %s1258 = smul.addr %s1257, 8
          %s1259 = scalar_lea.vmem [#allocation9], %s1258
          %1261 = dma.done %s1256, 128
        $region64: #{tpu_custom_call.1} parent=59 // pred_fallthru
          _
      $region60: #{tpu_custom_call.1} parent=5 // pred_fallthru
        _
    $region6: #{tpu_custom_call.1} parent=1 // loop_footer
      %s42 = sadd.s32 1, %s38
    $region7: #{tpu_custom_call.1} parent=1 // loop_footer_branch
      %37 = sbr.rel target = $region3
    $region8: #{tpu_custom_call.1} parent=1 // loop_exit
      _
    %1262 = vsyncpa [#allocation7], 1
    %s1263 = scalar_lea.sflag [#allocation7], 1
    %1264 = vsyncpa %s1263, 1
    %1265 = vsyncpa [#allocation8], 1
    %s1266 = scalar_lea.sflag [#allocation8], 1
    %1267 = vsyncpa %s1266, 1

</llo_original>
